<compile_context>
chip_gen: v7x
topology: tpu7x:2x2x1
jax: 0.10.0
libtpu: 0.0.40
codegen_flags: <defaults>
</compile_context>

<pallas_src>
import functools

import jax
import jax.numpy as jnp
from jax.experimental import pallas as pl
from jax.experimental.pallas import tpu as pltpu

IN_FEATURES = 108
HIDDEN = 128
OUT_FEATURES = 2

_MIN_TILE = 16      # bf16 vregs pack (16,128); also fine for f32
_MAX_TILE = 8192    # double-buffered tiles + compiler scratch stay inside the VMEM limit


def mlp_adult_kernel(x_ref, w1_ref, b1_ref, w2_ref, b2_ref, o_ref):
    # In-kernel cast of the raw f32 rows to the compute dtype (no-op on the f32 path).
    x = x_ref[...].astype(w1_ref.dtype)                            # (TB, 108)
    # Layer 1: (TB,108) @ (108,128) -> f32 accumulate; bias + tanh in f32.
    h = jnp.dot(x, w1_ref[...], preferred_element_type=jnp.float32)
    h = jnp.tanh(h + b1_ref[...])
    # Layer 2: (TB,128) @ (128,128 zero-padded) -> keep only the 2 real logits.
    logits = jnp.dot(h.astype(w2_ref.dtype), w2_ref[...],
                     preferred_element_type=jnp.float32)
    o_ref[...] = logits[:, :OUT_FEATURES] + b2_ref[...]            # (TB, 2) store


def prepare_params(w1, b1, w2, b2, dtype=jnp.bfloat16):
    """One-time weight prep (PyTorch nn.Linear layout in, MXU-friendly layout out).

    w1: (128,108), b1: (128,), w2: (2,128), b2: (2,)
    Returns: w1_t (108,128) dtype, b1_r (1,128) f32,
             w2_t (128,128) dtype (lanes 2..127 zero), b2_r (1,2) f32.
    """
    w1_t = w1.T.astype(dtype)                                           # (108,128)
    b1_r = b1.reshape(1, HIDDEN).astype(jnp.float32)                    # (1,128)
    w2_t = (jnp.zeros((HIDDEN, HIDDEN), jnp.float32)
            .at[:, :OUT_FEATURES].set(w2.T).astype(dtype))              # (128,128)
    b2_r = b2.reshape(1, OUT_FEATURES).astype(jnp.float32)              # (1,2)
    return w1_t, b1_r, w2_t, b2_r


def _round_up(v, m):
    return ((v + m - 1) // m) * m


@functools.partial(jax.jit, static_argnames=("tile_b",))
def mlp_adult_forward(x, w1_t, b1_r, w2_t, b2_r, tile_b=4096):
    """x: (B,108) f32 (unpadded, uncast); params from prepare_params(). Returns (B,2) f32."""
    B, K = x.shape
    assert K == IN_FEATURES

    # Tile choice: respect the cap, aim for >=2 grid steps (megacore / pipelining),
    # never below 16 rows, never (much) above the batch, always a multiple of 16.
    tile = min(int(tile_b), _MAX_TILE, _round_up(pl.cdiv(B, 2), _MIN_TILE))
    tile = max(_MIN_TILE, tile)
    tile = min(tile, _round_up(B, _MIN_TILE))
    tile = _round_up(tile, _MIN_TILE)
    grid = pl.cdiv(B, tile)

    return pl.pallas_call(
        mlp_adult_kernel,
        out_shape=jax.ShapeDtypeStruct((B, OUT_FEATURES), jnp.float32),
        grid=(grid,),
        in_specs=[
            pl.BlockSpec((tile, IN_FEATURES), lambda i: (i, 0)),    # x tiles (pipelined)
            pl.BlockSpec((IN_FEATURES, HIDDEN), lambda i: (0, 0)),  # W1 (VMEM-resident)
            pl.BlockSpec((1, HIDDEN), lambda i: (0, 0)),            # b1
            pl.BlockSpec((HIDDEN, HIDDEN), lambda i: (0, 0)),       # W2 (padded lanes)
            pl.BlockSpec((1, OUT_FEATURES), lambda i: (0, 0)),      # b2
        ],
        out_specs=pl.BlockSpec((tile, OUT_FEATURES), lambda i: (i, 0)),
        compiler_params=pltpu.CompilerParams(
            dimension_semantics=("parallel",),      # 2 TCs on v7x; no-op on v5e/v6e
            vmem_limit_bytes=40 * 1024 * 1024,      # headroom beyond v5e's 16 MiB default
        ),
    )(x, w1_t, b1_r, w2_t, b2_r)


def init_params(key):
    """Deterministic init mimicking PyTorch nn.Linear default U(-1/sqrt(fan_in), +)."""
    k1, k2, k3, k4 = jax.random.split(key, 4)
    bound1 = 1.0 / jnp.sqrt(108.0)
    bound2 = 1.0 / jnp.sqrt(128.0)
    w1 = jax.random.uniform(k1, (128, 108), jnp.float32, -bound1, bound1)
    b1 = jax.random.uniform(k2, (128,), jnp.float32, -bound1, bound1)
    w2 = jax.random.uniform(k3, (2, 128), jnp.float32, -bound2, bound2)
    b2 = jax.random.uniform(k4, (2,), jnp.float32, -bound2, bound2)
    return w1, b1, w2, b2


if __name__ == "__main__":
    key = jax.random.PRNGKey(0)
    kx, kx2, kp = jax.random.split(key, 3)
    w1, b1, w2, b2 = init_params(kp)

    # --- exact path: f32 params, tiny batch (single ragged block, masked store) ----
    B = 8
    x = jax.random.normal(kx, (B, IN_FEATURES), jnp.float32)
    params_f32 = prepare_params(w1, b1, w2, b2, dtype=jnp.float32)
    out_f32 = jax.block_until_ready(mlp_adult_forward(x, *params_f32))
    ref = jnp.tanh(x @ w1.T + b1) @ w2.T + b2
    assert out_f32.shape == (B, OUT_FEATURES)
    assert jnp.allclose(out_f32, ref, atol=1e-4, rtol=1e-4), \
        float(jnp.max(jnp.abs(out_f32 - ref)))

    # --- fast path: bf16 compute, uneven batch over a multi-step ragged grid -------
    B2 = 300
    x2 = jax.random.normal(kx2, (B2, IN_FEATURES), jnp.float32)
    params_bf16 = prepare_params(w1, b1, w2, b2, dtype=jnp.bfloat16)
    out_bf16 = jax.block_until_ready(
        mlp_adult_forward(x2, *params_bf16, tile_b=128))   # grid=(3,), ragged last block
    ref2 = jnp.tanh(x2 @ w1.T + b1) @ w2.T + b2
    assert out_bf16.shape == (B2, OUT_FEATURES)
    assert jnp.allclose(out_bf16, ref2, atol=3e-2, rtol=3e-2)

    # --- default path: auto tile -> >=2 grid steps even for this medium batch ------
    out_def = jax.block_until_ready(mlp_adult_forward(x2, *params_bf16))
    assert out_def.shape == (B2, OUT_FEATURES)
    assert jnp.allclose(out_def, ref2, atol=3e-2, rtol=3e-2)

    print("KERNEL_OK")
</pallas_src>

<mosaic_0001>
module attributes {stable_mosaic.version = 11 : i64} {
  func.func @mlp_adult_kernel(%arg0: i32, %arg1: memref<16x108xf32, #tpu.memory_space<vmem>>, %arg2: memref<108x128xf32, #tpu.memory_space<vmem>>, %arg3: memref<1x128xf32, #tpu.memory_space<vmem>>, %arg4: memref<128x128xf32, #tpu.memory_space<vmem>>, %arg5: memref<1x2xf32, #tpu.memory_space<vmem>>, %arg6: memref<16x2xf32, #tpu.memory_space<vmem>>) attributes {dimension_semantics = [#tpu.dimension_semantics<parallel>], iteration_bounds = array<i64: 1>, scalar_prefetch = 0 : i64, scratch_operands = 0 : i64, tpu.core_type = #tpu.core_type<tc>, window_params = [{transform_indices = @transform_0, window_bounds = array<i64: 16, 108>}, {pipeline_mode = #tpu.pipeline_mode<synchronous>, transform_indices = @transform_1, window_bounds = array<i64: 108, 128>}, {pipeline_mode = #tpu.pipeline_mode<synchronous>, transform_indices = @transform_2, window_bounds = array<i64: 1, 128>}, {pipeline_mode = #tpu.pipeline_mode<synchronous>, transform_indices = @transform_3, window_bounds = array<i64: 128, 128>}, {pipeline_mode = #tpu.pipeline_mode<synchronous>, transform_indices = @transform_4, window_bounds = array<i64: 1, 2>}, {transform_indices = @transform_5, window_bounds = array<i64: 16, 2>}]} {
    %c0 = arith.constant 0 : index
    %c0_0 = arith.constant 0 : index
    %0 = vector.load %arg1[%c0, %c0_0] : memref<16x108xf32, #tpu.memory_space<vmem>>, vector<16x108xf32>
    %c0_1 = arith.constant 0 : index
    %c0_2 = arith.constant 0 : index
    %1 = vector.load %arg2[%c0_1, %c0_2] : memref<108x128xf32, #tpu.memory_space<vmem>>, vector<108x128xf32>
    %cst = arith.constant dense<0.000000e+00> : vector<16x128xf32>
    %2 = tpu.matmul %0, %1, %cst {dimension_numbers = #tpu.dot_dimension_numbers<[1], [0], [0], [1], [0, 0, 1, 1], [], []>} : vector<16x108xf32>, vector<108x128xf32>, vector<16x128xf32> -> vector<16x128xf32>
    %c0_3 = arith.constant 0 : index
    %c0_4 = arith.constant 0 : index
    %3 = vector.load %arg3[%c0_3, %c0_4] : memref<1x128xf32, #tpu.memory_space<vmem>>, vector<1x128xf32>
    %4 = vector.broadcast %3 : vector<1x128xf32> to vector<16x128xf32>
    %5 = arith.addf %2, %4 : vector<16x128xf32>
    %6 = math.tanh %5 : vector<16x128xf32>
    %c0_5 = arith.constant 0 : index
    %c0_6 = arith.constant 0 : index
    %7 = vector.load %arg4[%c0_5, %c0_6] : memref<128x128xf32, #tpu.memory_space<vmem>>, vector<128x128xf32>
    %cst_7 = arith.constant dense<0.000000e+00> : vector<16x128xf32>
    %8 = tpu.matmul %6, %7, %cst_7 {dimension_numbers = #tpu.dot_dimension_numbers<[1], [0], [0], [1], [0, 0, 1, 1], [], []>} : vector<16x128xf32>, vector<128x128xf32>, vector<16x128xf32> -> vector<16x128xf32>
    %9 = vector.extract_strided_slice %8 {offsets = [0, 0], sizes = [16, 2], strides = [1, 1]} : vector<16x128xf32> to vector<16x2xf32>
    %c0_8 = arith.constant 0 : index
    %c0_9 = arith.constant 0 : index
    %10 = vector.load %arg5[%c0_8, %c0_9] : memref<1x2xf32, #tpu.memory_space<vmem>>, vector<1x2xf32>
    %11 = vector.broadcast %10 : vector<1x2xf32> to vector<16x2xf32>
    %12 = arith.addf %9, %11 : vector<16x2xf32>
    %c0_10 = arith.constant 0 : index
    %c0_11 = arith.constant 0 : index
    %13 = vector.load %arg6[%c0_10, %c0_11] : memref<16x2xf32, #tpu.memory_space<vmem>>, vector<16x2xf32>
    tpu.vector_store %arg6[%c0_10, %c0_11], %12 {strides = array<i32>} : memref<16x2xf32, #tpu.memory_space<vmem>>, vector<16x2xf32>,
    return
  }
  func.func @transform_0(%arg0: i32) -> (i32, i32) {
    %c0_i32 = arith.constant 0 : i32
    %c0_i32_0 = arith.constant 0 : i32
    return %arg0, %c0_i32 : i32, i32
  }
  func.func @transform_1(%arg0: i32) -> (i32, i32) {
    %c0_i32 = arith.constant 0 : i32
    %c0_i32_0 = arith.constant 0 : i32
    %c0_i32_1 = arith.constant 0 : i32
    return %c0_i32, %c0_i32_0 : i32, i32
  }
  func.func @transform_2(%arg0: i32) -> (i32, i32) {
    %c0_i32 = arith.constant 0 : i32
    %c0_i32_0 = arith.constant 0 : i32
    %c0_i32_1 = arith.constant 0 : i32
    return %c0_i32, %c0_i32_0 : i32, i32
  }
  func.func @transform_3(%arg0: i32) -> (i32, i32) {
    %c0_i32 = arith.constant 0 : i32
    %c0_i32_0 = arith.constant 0 : i32
    %c0_i32_1 = arith.constant 0 : i32
    return %c0_i32, %c0_i32_0 : i32, i32
  }
  func.func @transform_4(%arg0: i32) -> (i32, i32) {
    %c0_i32 = arith.constant 0 : i32
    %c0_i32_0 = arith.constant 0 : i32
    %c0_i32_1 = arith.constant 0 : i32
    return %c0_i32, %c0_i32_0 : i32, i32
  }
  func.func @transform_5(%arg0: i32) -> (i32, i32) {
    %c0_i32 = arith.constant 0 : i32
    %c0_i32_0 = arith.constant 0 : i32
    return %arg0, %c0_i32 : i32, i32
  }
}

</mosaic_0001>

<llo_original>
// kernel: mlp_adult_forward.1
$region0: #{mlp_adult_forward.1}
  #allocation0 [shape = 'u32[]', space=smem, size = 0x4, offset = 0x4, fixed_abs, tag = 'smem constant byte address 0x4 - core index']
  #allocation1 [shape = 'u32[144,128]{1,0:T(1,128)}', space=vmem, size = 0x12000, scoped, tag = 'internal scratch']
  %s0 = inlined_call_operand.hbm [shape: f32[8,108], index: 0, kind: input, shape index: {}]
  %s1 = inlined_call_operand.hbm [shape: f32[108,128], index: 1, kind: input, shape index: {}]
  %s2 = inlined_call_operand.vmem [shape: f32[1,128], index: 2, kind: input, shape index: {}]
  %s3 = inlined_call_operand.hbm [shape: f32[128,128], index: 3, kind: input, shape index: {}]
  %s4 = inlined_call_operand.vmem [shape: f32[1,2], index: 4, kind: input, shape index: {}]
  %s5 = inlined_call_operand.vmem [shape: f32[8,2], index: 5, kind: output, shape index: {}]
  %s6 = sld [smem:[#allocation0]]
  $region76: #{mlp_adult_forward.1} parent=0
    _
  %s8 = ssub.s32 1, %s6
  %s9 = scalar_select 0, %s8, %s6
  $region1: #{mlp_adult_forward.1} parent=0
    #allocation2 [shape = 'u8[8192]{0}', space=vmem, size = 0x2000, scoped, tag = 'input window, operand 0, single buffered']
    #allocation3 [shape = 's32[1]{0}', space=sflag, size = 0x4, scoped, tag = 'scoped memory for mlp_adult_forward.1']
    #allocation4 [shape = 'u8[57344]{0}', space=vmem, size = 0xe000, scoped, tag = 'input window, operand 1, single buffered']
    #allocation5 [shape = 's32[1]{0}', space=sflag, size = 0x4, scoped, tag = 'scoped memory for mlp_adult_forward.1']
    #allocation6 [shape = 'u8[65536]{0}', space=vmem, size = 0x10000, scoped, tag = 'input window, operand 3, single buffered']
    #allocation7 [shape = 'u8[8192]{0}', space=vmem, size = 0x2000, scoped, tag = 'output window, operand 0, single buffered']
    %10 = vsyncpa [#allocation3], 0
    %11 = vsyncpa [#allocation5], 0
    // Predicated region
    $region2: #{mlp_adult_forward.1} parent=1 // pred_check
      _
    $region3: #{mlp_adult_forward.1} parent=1 // pred_check_branch
      %13 = sbr.rel (0) target = $region5
    $region4: #{mlp_adult_forward.1} parent=1 // pred_region
      %s15 = ssub.s32 256, 128
      %16 = vsyncadd [#allocation3], %s15
      %s17 = sshll.u32 [#allocation2], 4
      %s18 = int_to_ptr.vmem [resolvable:$true] %s17
      %23 = dma.hbm_to_vmem [thread:$0]  %s0, 128, %s18, [#allocation3], 128, 128, 8
    $region5: #{mlp_adult_forward.1} parent=1 // pred_fallthru
      _
    // Predicated region
    $region6: #{mlp_adult_forward.1} parent=1 // pred_check
      _
    $region7: #{mlp_adult_forward.1} parent=1 // pred_check_branch
      %25 = sbr.rel (0) target = $region9
    $region8: #{mlp_adult_forward.1} parent=1 // pred_region
      %s27 = ssub.s32 1792, 1792
      %28 = vsyncadd [#allocation5], %s27
      %s29 = sshll.u32 [#allocation4], 4
      %s30 = int_to_ptr.vmem [resolvable:$true] %s29
      %35 = dma.hbm_to_vmem [thread:$0]  %s1, 1792, %s30, [#allocation5], 128, 128, 8
    $region9: #{mlp_adult_forward.1} parent=1 // pred_fallthru
      _
    // Predicated region
    $region10: #{mlp_adult_forward.1} parent=1 // pred_check
      _
    $region11: #{mlp_adult_forward.1} parent=1 // pred_check_branch
      %37 = sbr.rel (0) target = $region13
    $region12: #{mlp_adult_forward.1} parent=1 // pred_region
      _
    $region13: #{mlp_adult_forward.1} parent=1 // pred_fallthru
      _
    // Predicated region
    $region14: #{mlp_adult_forward.1} parent=1 // pred_check
      _
    $region15: #{mlp_adult_forward.1} parent=1 // pred_check_branch
      %39 = sbr.rel (0) target = $region17
    $region16: #{mlp_adult_forward.1} parent=1 // pred_region
      %s41 = ssub.s32 2048, 2048
      %42 = vsyncadd [#allocation5], %s41
      %s43 = sshll.u32 [#allocation6], 4
      %s44 = int_to_ptr.vmem [resolvable:$true] %s43
      %49 = dma.hbm_to_vmem [thread:$0]  %s3, 2048, %s44, [#allocation5], 128, 128, 8
    $region17: #{mlp_adult_forward.1} parent=1 // pred_fallthru
      _
    // Predicated region
    $region18: #{mlp_adult_forward.1} parent=1 // pred_check
      _
    $region19: #{mlp_adult_forward.1} parent=1 // pred_check_branch
      %51 = sbr.rel (0) target = $region21
    $region20: #{mlp_adult_forward.1} parent=1 // pred_region
      _
    $region21: #{mlp_adult_forward.1} parent=1 // pred_fallthru
      _
    // Predicated region
    $region22: #{mlp_adult_forward.1} parent=1 // pred_check
      _
    $region23: #{mlp_adult_forward.1} parent=1 // pred_check_branch
      %53 = sbr.rel (0) target = $region25
    $region24: #{mlp_adult_forward.1} parent=1 // pred_region
      %54 = dma.done [#allocation3], 256
    $region25: #{mlp_adult_forward.1} parent=1 // pred_fallthru
      _
    // Predicated region
    $region26: #{mlp_adult_forward.1} parent=1 // pred_check
      _
    $region27: #{mlp_adult_forward.1} parent=1 // pred_check_branch
      %56 = sbr.rel (0) target = $region29
    $region28: #{mlp_adult_forward.1} parent=1 // pred_region
      %57 = dma.done [#allocation5], 1792
    $region29: #{mlp_adult_forward.1} parent=1 // pred_fallthru
      _
    // Predicated region
    $region30: #{mlp_adult_forward.1} parent=1 // pred_check
      _
    $region31: #{mlp_adult_forward.1} parent=1 // pred_check_branch
      %59 = sbr.rel (0) target = $region33
    $region32: #{mlp_adult_forward.1} parent=1 // pred_region
      %60 = dma.done [#allocation5], 2048
    $region33: #{mlp_adult_forward.1} parent=1 // pred_fallthru
      _
    %v61 = vld [vmem:[#allocation2] sm:$0xff]
    %v62 = vld [vmem:[#allocation2 + $0x8] sm:$0xff]
    %v63 = vld [vmem:[#allocation4] sm:$0xff]
    %v64 = vld [vmem:[#allocation4 + $0x8] sm:$0xff]
    %v65 = vld [vmem:[#allocation4 + $0x10] sm:$0xff]
    %v66 = vld [vmem:[#allocation4 + $0x18] sm:$0xff]
    %v67 = vld [vmem:[#allocation4 + $0x20] sm:$0xff]
    %v68 = vld [vmem:[#allocation4 + $0x28] sm:$0xff]
    %v69 = vld [vmem:[#allocation4 + $0x30] sm:$0xff]
    %v70 = vld [vmem:[#allocation4 + $0x38] sm:$0xff]
    %v71 = vld [vmem:[#allocation4 + $0x40] sm:$0xff]
    %v72 = vld [vmem:[#allocation4 + $0x48] sm:$0xff]
    %v73 = vld [vmem:[#allocation4 + $0x50] sm:$0xff]
    %v74 = vld [vmem:[#allocation4 + $0x58] sm:$0xff]
    %v75 = vld [vmem:[#allocation4 + $0x60] sm:$0xff]
    %v76 = vld [vmem:[#allocation4 + $0x68] sm:$0xf]
    %v77 = vld [vmem:[%s2] sm:$0x1]
    %v79 = vlaneseq
    %v80 = vshrl.u32 %v79, 7
    %v81 = vsub.s32 0, %v80
    %v82 = vrot.slane %v77, %v81
    %vm84 = vcmask 883712
    %v86 = vsel %vm84, %v61, 0
    %v89 = vsel %vm84, %v62, 0
    %vm91 = vcmask 1043456
    %v93 = vsel %vm91, %v76, 0
    %95 = vmatprep.subr.mxu0 0.0
    %96 = vmatpush1.msra.mxu0 %v63
    %97 = vmatprep.subr.mxu0 0.0
    %98 = vmatpush1.msra.mxu0 %v64
    %99 = vmatprep.subr.mxu0 0.0
    %100 = vmatpush1.msra.mxu0 %v65
    %101 = vmatprep.subr.mxu0 0.0
    %102 = vmatpush1.msra.mxu0 %v66
    %103 = vmatprep.subr.mxu0 0.0
    %104 = vmatpush1.msra.mxu0 %v67
    %105 = vmatprep.subr.mxu0 0.0
    %106 = vmatpush1.msra.mxu0 %v68
    %107 = vmatprep.subr.mxu0 0.0
    %108 = vmatpush1.msra.mxu0 %v69
    %109 = vmatprep.subr.mxu0 0.0
    %110 = vmatpush1.msra.mxu0 %v70
    %111 = vmatprep.subr.mxu0 0.0
    %112 = vmatpush1.msra.mxu0 %v71
    %113 = vmatprep.subr.mxu0 0.0
    %114 = vmatpush1.msra.mxu0 %v72
    %115 = vmatprep.subr.mxu0 0.0
    %116 = vmatpush1.msra.mxu0 %v73
    %117 = vmatprep.subr.mxu0 0.0
    %118 = vmatpush1.msra.mxu0 %v74
    %119 = vmatprep.subr.mxu0 0.0
    %120 = vmatpush1.msra.mxu0 %v75
    %121 = vmatprep.subr.mxu0 0.0
    %122 = vmatpush1.msra.mxu0 %v93
    %123 = vmatprep.subr.mxu0 0.0
    %124 = vmatpush1.msra.mxu0 0.0
    %125 = vmatprep.subr.mxu0 0.0
    %126 = vmatpush1.msra.mxu0 0.0
    %127 = vmatprep.subr.mxu0 0.0
    %128 = vmatpush1.msra.mxu0 0.0
    %129 = vmatprep.subr.mxu0 0.0
    %130 = vmatpush1.msra.mxu0 0.0
    %131 = vmatprep.subr.mxu0 0.0
    %132 = vmatpush1.msra.mxu0 0.0
    %133 = vmatprep.subr.mxu0 0.0
    %134 = vmatpush1.msra.mxu0 0.0
    %135 = vmatprep.subr.mxu0 0.0
    %136 = vmatpush1.msra.mxu0 0.0
    %137 = vmatprep.subr.mxu0 0.0
    %138 = vmatpush1.msra.mxu0 0.0
    %139 = vmatprep.subr.mxu0 0.0
    %140 = vmatpush1.msra.mxu0 0.0
    %141 = vmatprep.subr.mxu0 0.0
    %142 = vmatpush1.msra.mxu0 0.0
    %143 = vmatprep.subr.mxu0 0.0
    %144 = vmatpush1.msra.mxu0 0.0
    %145 = vmatprep.subr.mxu0 0.0
    %146 = vmatpush1.msra.mxu0 0.0
    %147 = vmatprep.subr.mxu0 0.0
    %148 = vmatpush1.msra.mxu0 0.0
    %149 = vmatprep.subr.mxu0 0.0
    %150 = vmatpush1.msra.mxu0 0.0
    %151 = vmatprep.subr.mxu0 0.0
    %152 = vmatpush1.msra.mxu0 0.0
    %153 = vmatprep.subr.mxu0 0.0
    %154 = vmatpush1.msra.mxu0 0.0
    %155 = vmatprep.subr.mxu0 0.0
    %156 = vmatpush1.msra.mxu0 0.0
    %157 = vmatprep.subr.mxu0 0.0
    %158 = vmatpush1.msra.mxu0 0.0
    %159 = vmatprep.mubr.f32.mxu0 0.0
    %160 = vmatmul.mubr.f32.gmra.mrb[0].mxu0 %v86
    %v161 = vpop.f32.mrb[0].mxu0
    %v162 = vadd.f32 %v82, %v161
    %v163 = vpop.f32.mrb[0].mxu0
    %164 = vmatprep.mubr.f32.mxu0 0.0
    %165 = vmatmul.mubr.f32.gmra.mrb[0].mxu0 %v89
    %v166 = vpop.f32.mrb[0].mxu0
    %v167 = vadd.f32 %v82, %v166
    %v168 = vpop.f32.mrb[0].mxu0
    %169 = vdwg.mxu0
    %v170 = vtanh.pop %v162
    %v171 = vtanh.pop %v167
    %v172 = vld [vmem:[#allocation6] sm:$0xff]
    %v173 = vld [vmem:[#allocation6 + $0x8] sm:$0xff]
    %v174 = vld [vmem:[#allocation6 + $0x10] sm:$0xff]
    %v175 = vld [vmem:[#allocation6 + $0x18] sm:$0xff]
    %v176 = vld [vmem:[#allocation6 + $0x20] sm:$0xff]
    %v177 = vld [vmem:[#allocation6 + $0x28] sm:$0xff]
    %v178 = vld [vmem:[#allocation6 + $0x30] sm:$0xff]
    %v179 = vld [vmem:[#allocation6 + $0x38] sm:$0xff]
    %v180 = vld [vmem:[#allocation6 + $0x40] sm:$0xff]
    %v181 = vld [vmem:[#allocation6 + $0x48] sm:$0xff]
    %v182 = vld [vmem:[#allocation6 + $0x50] sm:$0xff]
    %v183 = vld [vmem:[#allocation6 + $0x58] sm:$0xff]
    %v184 = vld [vmem:[#allocation6 + $0x60] sm:$0xff]
    %v185 = vld [vmem:[#allocation6 + $0x68] sm:$0xff]
    %v186 = vld [vmem:[#allocation6 + $0x70] sm:$0xff]
    %v187 = vld [vmem:[#allocation6 + $0x78] sm:$0xff]
    %188 = vmatprep.subr.mxu0 0.0
    %189 = vmatpush1.msra.mxu0 %v172
    %190 = vmatprep.subr.mxu0 0.0
    %191 = vmatpush1.msra.mxu0 %v173
    %192 = vmatprep.subr.mxu0 0.0
    %193 = vmatpush1.msra.mxu0 %v174
    %194 = vmatprep.subr.mxu0 0.0
    %195 = vmatpush1.msra.mxu0 %v175
    %196 = vmatprep.subr.mxu0 0.0
    %197 = vmatpush1.msra.mxu0 %v176
    %198 = vmatprep.subr.mxu0 0.0
    %199 = vmatpush1.msra.mxu0 %v177
    %200 = vmatprep.subr.mxu0 0.0
    %201 = vmatpush1.msra.mxu0 %v178
    %202 = vmatprep.subr.mxu0 0.0
    %203 = vmatpush1.msra.mxu0 %v179
    %204 = vmatprep.subr.mxu0 0.0
    %205 = vmatpush1.msra.mxu0 %v180
    %206 = vmatprep.subr.mxu0 0.0
    %207 = vmatpush1.msra.mxu0 %v181
    %208 = vmatprep.subr.mxu0 0.0
    %209 = vmatpush1.msra.mxu0 %v182
    %210 = vmatprep.subr.mxu0 0.0
    %211 = vmatpush1.msra.mxu0 %v183
    %212 = vmatprep.subr.mxu0 0.0
    %213 = vmatpush1.msra.mxu0 %v184
    %214 = vmatprep.subr.mxu0 0.0
    %215 = vmatpush1.msra.mxu0 %v185
    %216 = vmatprep.subr.mxu0 0.0
    %217 = vmatpush1.msra.mxu0 %v186
    %218 = vmatprep.subr.mxu0 0.0
    %219 = vmatpush1.msra.mxu0 %v187
    %220 = vmatprep.subr.mxu0 0.0
    %221 = vmatpush1.msra.mxu0 0.0
    %222 = vmatprep.subr.mxu0 0.0
    %223 = vmatpush1.msra.mxu0 0.0
    %224 = vmatprep.subr.mxu0 0.0
    %225 = vmatpush1.msra.mxu0 0.0
    %226 = vmatprep.subr.mxu0 0.0
    %227 = vmatpush1.msra.mxu0 0.0
    %228 = vmatprep.subr.mxu0 0.0
    %229 = vmatpush1.msra.mxu0 0.0
    %230 = vmatprep.subr.mxu0 0.0
    %231 = vmatpush1.msra.mxu0 0.0
    %232 = vmatprep.subr.mxu0 0.0
    %233 = vmatpush1.msra.mxu0 0.0
    %234 = vmatprep.subr.mxu0 0.0
    %235 = vmatpush1.msra.mxu0 0.0
    %236 = vmatprep.subr.mxu0 0.0
    %237 = vmatpush1.msra.mxu0 0.0
    %238 = vmatprep.subr.mxu0 0.0
    %239 = vmatpush1.msra.mxu0 0.0
    %240 = vmatprep.subr.mxu0 0.0
    %241 = vmatpush1.msra.mxu0 0.0
    %242 = vmatprep.subr.mxu0 0.0
    %243 = vmatpush1.msra.mxu0 0.0
    %244 = vmatprep.subr.mxu0 0.0
    %245 = vmatpush1.msra.mxu0 0.0
    %246 = vmatprep.subr.mxu0 0.0
    %247 = vmatpush1.msra.mxu0 0.0
    %248 = vmatprep.subr.mxu0 0.0
    %249 = vmatpush1.msra.mxu0 0.0
    %250 = vmatprep.subr.mxu0 0.0
    %251 = vmatpush1.msra.mxu0 0.0
    %252 = vmatprep.mubr.f32.mxu0 0.0
    %253 = vmatmul.mubr.f32.gmra.mrb[0].mxu0 %v170
    %v254 = vpop.f32.mrb[0].mxu0
    %v255 = vadd.f32 0.0, %v254
    %v256 = vpop.f32.mrb[0].mxu0
    %257 = vmatprep.mubr.f32.mxu0 0.0
    %258 = vmatmul.mubr.f32.gmra.mrb[0].mxu0 %v171
    %v259 = vpop.f32.mrb[0].mxu0
    %v260 = vadd.f32 0.0, %v259
    %v261 = vpop.f32.mrb[0].mxu0
    %262 = vdwg.mxu0
    %v263 = vld [vmem:[%s4] sm:$0x1]
    %v265 = vlaneseq
    %v266 = vshrl.u32 %v265, 7
    %v267 = vsub.s32 0, %v266
    %v268 = vrot.slane %v263, %v267
    %v270 = vadd.f32 %v255, %v268
    %v271 = vadd.f32 %v260, %v268
    %vm272 = vcmask 15360
    %273 = vst.msk [vmem:[#allocation7] sm:$0xff] %vm272, %v270
    %274 = vst.msk [vmem:[#allocation7 + $0x8] sm:$0xff] %vm272, %v271
    // Predicated region
    $region34: #{mlp_adult_forward.1} parent=1 // pred_check
      _
    $region35: #{mlp_adult_forward.1} parent=1 // pred_check_branch
      %276 = sbr.rel (0) target = $region37
    $region36: #{mlp_adult_forward.1} parent=1 // pred_region
      // Predicated region
      $region38: #{mlp_adult_forward.1} parent=36 // pred_check
        _
      $region39: #{mlp_adult_forward.1} parent=36 // pred_check_branch
        %278 = sbr.rel (0) target = $region41
      $region40: #{mlp_adult_forward.1} parent=36 // pred_region
        // Predicated region
        $region42: #{mlp_adult_forward.1} parent=40 // pred_check
          _
        $region43: #{mlp_adult_forward.1} parent=40 // pred_check_branch
          %280 = sbr.rel (0) target = $region45
        $region44: #{mlp_adult_forward.1} parent=40 // pred_region
          // Predicated region
          $region57: #{mlp_adult_forward.1} parent=44 // pred_check
            _
          $region58: #{mlp_adult_forward.1} parent=44 // pred_check_branch
            %295 = sbr.rel (0) target = $region60
          $region59: #{mlp_adult_forward.1} parent=44 // pred_region
            loop: start=0, step=1, limit=1
            $region61: #{mlp_adult_forward.1} parent=59 // loop_pre_header
              _
            $region62: #{mlp_adult_forward.1} parent=59 // loop_header
              %s297 = sphi 0, %s301
              %p298 = scmp.ge.s32.totalorder %s297, 1
              %s302 = sphi [#allocation7], [#allocation7]
              %s303 = sphi %s5, %s5
            $region63: #{mlp_adult_forward.1} parent=59 // loop_header_branch
              %300 = sbr.rel (%p298) target = $region67
            $region64: #{mlp_adult_forward.1} parent=59 // loop_body
              %v304 = vld [vmem:[%s302] sm:$0xff]
              %305 = vst [vmem:[%s303] sm:$0xff] %v304
            $region65: #{mlp_adult_forward.1} parent=59 // loop_footer
              %s301 = sadd.s32 1, %s297
            $region66: #{mlp_adult_forward.1} parent=59 // loop_footer_branch
              %296 = sbr.rel target = $region62
            $region67: #{mlp_adult_forward.1} parent=59 // loop_exit
              _
          $region60: #{mlp_adult_forward.1} parent=44 // pred_fallthru
            _
          // Predicated region
          $region68: #{mlp_adult_forward.1} parent=44 // pred_check
            _
          $region69: #{mlp_adult_forward.1} parent=44 // pred_check_branch
            %307 = sbr.rel target = $region71
          $region70: #{mlp_adult_forward.1} parent=44 // pred_region
            _
          $region71: #{mlp_adult_forward.1} parent=44 // pred_fallthru
            _
        $region45: #{mlp_adult_forward.1} parent=40 // pred_fallthru
          _
        // Predicated region
        $region46: #{mlp_adult_forward.1} parent=40 // pred_check
          _
        $region47: #{mlp_adult_forward.1} parent=40 // pred_check_branch
          %282 = sbr.rel target = $region49
        $region48: #{mlp_adult_forward.1} parent=40 // pred_region
          loop: start=0, step=1, limit=1
          $region50: #{mlp_adult_forward.1} parent=48 // loop_pre_header
            _
          $region51: #{mlp_adult_forward.1} parent=48 // loop_header
            %s285 = sphi 0, %s289
            %p286 = scmp.ge.s32.totalorder %s285, 1
            %s290 = sphi [#allocation7], [#allocation7]
            %s291 = sphi %s5, %s5
          $region52: #{mlp_adult_forward.1} parent=48 // loop_header_branch
            %288 = sbr.rel (%p286) target = $region56
          $region53: #{mlp_adult_forward.1} parent=48 // loop_body
            %v292 = vld [vmem:[%s290] sm:$0xff]
            %293 = vst [vmem:[%s291] sm:$0xff] %v292
          $region54: #{mlp_adult_forward.1} parent=48 // loop_footer
            %s289 = sadd.s32 1, %s285
          $region55: #{mlp_adult_forward.1} parent=48 // loop_footer_branch
            %284 = sbr.rel target = $region51
          $region56: #{mlp_adult_forward.1} parent=48 // loop_exit
            _
        $region49: #{mlp_adult_forward.1} parent=40 // pred_fallthru
          _
      $region41: #{mlp_adult_forward.1} parent=36 // pred_fallthru
        _
      %308 = vnop
    $region37: #{mlp_adult_forward.1} parent=1 // pred_fallthru
      _
    // Predicated region
    $region72: #{mlp_adult_forward.1} parent=1 // pred_check
      _
    $region73: #{mlp_adult_forward.1} parent=1 // pred_check_branch
      %310 = sbr.rel (0) target = $region75
    $region74: #{mlp_adult_forward.1} parent=1 // pred_region
      _
    $region75: #{mlp_adult_forward.1} parent=1 // pred_fallthru
      _
    %311 = vsyncpa [#allocation3], 1
    %312 = vsyncpa [#allocation5], 1

</llo_original>
